<compile_context>
chip_gen: v5e
topology: v5e:2x2
jax: 0.10.0
libtpu: 0.0.40
codegen_flags: <defaults>
</compile_context>

<pallas_src>
import math
import jax
import jax.numpy as jnp
from jax.experimental import pallas as pl
from jax.experimental.pallas import tpu as pltpu


# ---------------------------------------------------------------------------
# Pallas kernels (one fused pallas_call per module)
# ---------------------------------------------------------------------------

def _cross_attn_fused_kernel(x_ref, y_ref, wq_ref, bq_ref, wk_ref, bk_ref,
                             wv_ref, bv_ref, o_ref):
    """CrossModalAttention.forward (mask=None, eval).

    x: [B, Sx, D], y: [B, Sy, D]; weights pre-transposed to [D, D],
    biases [1, D].  Everything (projections, attention, residual) stays in
    VMEM — single dispatch, no HBM intermediates.
    """
    B, Sx, D = x_ref.shape
    Sy = y_ref.shape[1]
    x = x_ref[...]
    y = y_ref[...]
    # Collapse the (batch, seq) leading dims so the projections are plain
    # 2-D MXU matmuls (Sx/Sy are sublane-tile aligned in the demo shapes).
    x2 = x.reshape(B * Sx, D)
    y2 = y.reshape(B * Sy, D)
    q = (jnp.dot(x2, wq_ref[...], preferred_element_type=jnp.float32)
         + bq_ref[...]).reshape(B, Sx, D)
    k = (jnp.dot(y2, wk_ref[...], preferred_element_type=jnp.float32)
         + bk_ref[...]).reshape(B, Sy, D)
    v = (jnp.dot(y2, wv_ref[...], preferred_element_type=jnp.float32)
         + bv_ref[...]).reshape(B, Sy, D)
    # torch.bmm(q, k.transpose(1, 2))  (CrossModalAttention has no 1/sqrt(d))
    scores = jnp.einsum('bqd,bkd->bqk', q, k,
                        preferred_element_type=jnp.float32)          # [B,Sx,Sy]
    m = jnp.max(scores, axis=-1, keepdims=True)
    e = jnp.exp(scores - m)
    w = e * pl.reciprocal(jnp.sum(e, axis=-1, keepdims=True), approx=True)
    attn = jnp.einsum('bqk,bkd->bqd', w, v,
                      preferred_element_type=jnp.float32)             # [B,Sx,D]
    o_ref[...] = attn + x                                             # dropout = id (eval)


def _dual_mha_s1_kernel(a_ref, v_ref, w2_ref, b2_ref, w3_ref, b3_ref,
                        fea1_ref, fea2_ref):
    """MultiHeadedAttention.forward for 2-D inputs (seq_len == 1 after .view()).

    With a single key position, softmax is identically 1, so the attention
    output equals the head-split value projection; merging heads back gives
    exactly  out = W3( W2(value) )  — bit-compatible with the PyTorch path.
    Both att(graph_out_A, ...) and att(graph_out_V, ...) calls of LGGCN are
    computed here in one dispatch (weights resident in VMEM once).
    """
    n = a_ref.shape[0]
    x = jnp.concatenate([a_ref[...], v_ref[...]], axis=0)             # [2n, D]
    h = jnp.dot(x, w2_ref[...], preferred_element_type=jnp.float32) + b2_ref[...]
    out = jnp.dot(h, w3_ref[...], preferred_element_type=jnp.float32) + b3_ref[...]
    fea1_ref[...] = out[:n]                                           # dropout = id (eval)
    fea2_ref[...] = out[n:]


def _score_fusion_kernel(s_ref, st_ref, sa_ref, sv_ref, yhat_ref):
    """scores = score + 0.7*score_T + 0.2*score_V + 0.1*score_A ; argmax.

    log_softmax is dropped: argmax is invariant under it and the log-probs are
    never returned by LGGCN.forward.  Tie-break = first index achieving the
    row max (matches torch.argmax semantics).
    """
    scores = (s_ref[...] + 0.7 * st_ref[...] + 0.2 * sv_ref[...]
              + 0.1 * sa_ref[...])
    num_classes = scores.shape[-1]
    col = jax.lax.broadcasted_iota(jnp.int32, scores.shape, 1)
    is_max = scores == jnp.max(scores, axis=-1, keepdims=True)
    yhat_ref[...] = jnp.min(jnp.where(is_max, col, num_classes),
                            axis=-1, keepdims=True)


# ---------------------------------------------------------------------------
# Wrappers
# ---------------------------------------------------------------------------

_ARB = pltpu.CompilerParams(dimension_semantics=("arbitrary",))


def cross_modal_attention(x, y, p):
    """CrossModalAttention.forward (mask=None, eval). x: [B,Sx,D], y: [B,Sy,D]."""
    B, Sx, D = x.shape
    Sy = y.shape[1]
    full3_x = pl.BlockSpec((B, Sx, D), lambda i: (0, 0, 0))
    full3_y = pl.BlockSpec((B, Sy, D), lambda i: (0, 0, 0))
    w_spec = pl.BlockSpec((D, D), lambda i: (0, 0))
    b_spec = pl.BlockSpec((1, D), lambda i: (0, 0))
    return pl.pallas_call(
        _cross_attn_fused_kernel,
        grid=(1,),
        in_specs=[full3_x, full3_y, w_spec, b_spec, w_spec, b_spec, w_spec, b_spec],
        out_specs=full3_x,
        out_shape=jax.ShapeDtypeStruct((B, Sx, D), jnp.float32),
        compiler_params=_ARB,
    )(x, y, p["wq_t"], p["bq"], p["wk_t"], p["bk"], p["wv_t"], p["bv"])


def dual_multi_headed_attention_s1(graph_out_A, graph_out_V, p):
    """Both self.att(...) calls of LGGCN (2-D inputs => seq_len 1) in one kernel.

    Returns (fea1, fea2), each [N, d_model] (== PyTorch output squeezed at dim 1).
    Only the value projection (linears[2]) and the output projection
    (linears[3]) are needed — q/k projections are dead work for seq_len 1.
    """
    n, d = graph_out_A.shape
    x_spec = pl.BlockSpec((n, d), lambda i: (0, 0))
    w_spec = pl.BlockSpec((d, d), lambda i: (0, 0))
    b_spec = pl.BlockSpec((1, d), lambda i: (0, 0))
    fea1, fea2 = pl.pallas_call(
        _dual_mha_s1_kernel,
        grid=(1,),
        in_specs=[x_spec, x_spec, w_spec, b_spec, w_spec, b_spec],
        out_specs=(x_spec, x_spec),
        out_shape=(jax.ShapeDtypeStruct((n, d), jnp.float32),
                   jax.ShapeDtypeStruct((n, d), jnp.float32)),
        compiler_params=_ARB,
    )(graph_out_A, graph_out_V, p["w2_t"], p["b2"], p["w3_t"], p["b3"])
    return fea1, fea2


def score_fusion_argmax(score, score_T, score_A, score_V):
    n, c = score.shape
    s_spec = pl.BlockSpec((n, c), lambda i: (0, 0))
    yhat = pl.pallas_call(
        _score_fusion_kernel,
        grid=(1,),
        in_specs=[s_spec] * 4,
        out_specs=pl.BlockSpec((n, 1), lambda i: (0, 0)),
        out_shape=jax.ShapeDtypeStruct((n, 1), jnp.int32),
        compiler_params=_ARB,
    )(score, score_T, score_A, score_V)
    return yhat[:, 0]


def lggcn_forward(graph_out_T, graph_out_A, graph_out_V,
                  score, score_T, score_A, score_V, params):
    """LGGCN.forward tail: MultiHeadedAttention fusion + score fusion.

    # TODO(synk): SGCN/GCN/Classifier/ContextualEncoder/batch_graphify are
    # external himallgg code (not provided); graph_out_* and score_* stand in
    # for their outputs.
    """
    fea1, fea2 = dual_multi_headed_attention_s1(graph_out_A, graph_out_V,
                                                params["att"])
    features_graph = jnp.concatenate([graph_out_T, fea1, fea2], axis=-1)  # [N, 3*g_dim]
    y_hat = score_fusion_argmax(score, score_T, score_A, score_V)
    return y_hat, features_graph


# ---------------------------------------------------------------------------
# Deterministic parameter init (PyTorch nn.Linear-style uniform), weights
# pre-transposed once to [in, out] and biases reshaped to [1, out].
# ---------------------------------------------------------------------------

def _init_linear_t(key, out_f, in_f):
    kw, kb = jax.random.split(key)
    bound = 1.0 / math.sqrt(in_f)
    w = jax.random.uniform(kw, (out_f, in_f), jnp.float32, -bound, bound)
    b = jax.random.uniform(kb, (out_f,), jnp.float32, -bound, bound)
    return w.T, b.reshape(1, out_f)        # transpose ONCE at init


def init_params(key, g_dim):
    keys = jax.random.split(key, 7)
    wq_t, bq = _init_linear_t(keys[0], g_dim, g_dim)
    wk_t, bk = _init_linear_t(keys[1], g_dim, g_dim)
    wv_t, bv = _init_linear_t(keys[2], g_dim, g_dim)
    att = {}
    for i in range(4):
        w_t, b = _init_linear_t(keys[3 + i], g_dim, g_dim)
        att[f"w{i}_t"] = w_t               # w0/w1 are dead for seq_len==1 inputs
        att[f"b{i}"] = b
    return {
        "cross": {"wq_t": wq_t, "bq": bq, "wk_t": wk_t, "bk": bk,
                  "wv_t": wv_t, "bv": bv},
        "att": att,
    }


# ---------------------------------------------------------------------------
# Demo
# ---------------------------------------------------------------------------

if __name__ == "__main__":
    g_dim = 160        # LGGCN g_dim
    tag_size = 6       # LGGCN tag_size
    n_nodes = 8        # total utterance nodes (batch_graphify output rows)
    B, S = 2, 8        # small seq shapes for the CrossModalAttention demo

    key = jax.random.PRNGKey(0)
    kp, k1, k2, k3, k4, k5, k6, k7, k8, k9 = jax.random.split(key, 10)
    params = init_params(kp, g_dim)

    # Stand-ins for SGCN outputs (graph node features per modality).
    graph_out_T = jax.random.normal(k1, (n_nodes, g_dim), jnp.float32)
    graph_out_A = jax.random.normal(k2, (n_nodes, g_dim), jnp.float32)
    graph_out_V = jax.random.normal(k3, (n_nodes, g_dim), jnp.float32)

    # Stand-ins for Classifier.get_prob1 outputs.
    score = jax.random.normal(k4, (n_nodes, tag_size), jnp.float32)
    score_T = jax.random.normal(k5, (n_nodes, tag_size), jnp.float32)
    score_A = jax.random.normal(k6, (n_nodes, tag_size), jnp.float32)
    score_V = jax.random.normal(k7, (n_nodes, tag_size), jnp.float32)

    y_hat, features_graph = lggcn_forward(
        graph_out_T, graph_out_A, graph_out_V,
        score, score_T, score_A, score_V, params)

    # Exercise the CrossModalAttention submodule kernel as well.
    x_seq = jax.random.normal(k8, (B, S, g_dim), jnp.float32)
    y_seq = jax.random.normal(k9, (B, S, g_dim), jnp.float32)
    cross_out = cross_modal_attention(x_seq, y_seq, params["cross"])

    jax.block_until_ready((y_hat, features_graph, cross_out))

    assert y_hat.shape == (n_nodes,)
    assert y_hat.dtype == jnp.int32
    assert features_graph.shape == (n_nodes, 3 * g_dim)
    assert cross_out.shape == (B, S, g_dim)
    print("KERNEL_OK")
</pallas_src>

<mosaic_0001>
module attributes {stable_mosaic.version = 11 : i64} {
  func.func @_dual_mha_s1_kernel(%arg0: i32, %arg1: memref<8x160xf32, #tpu.memory_space<vmem>>, %arg2: memref<8x160xf32, #tpu.memory_space<vmem>>, %arg3: memref<160x160xf32, #tpu.memory_space<vmem>>, %arg4: memref<1x160xf32, #tpu.memory_space<vmem>>, %arg5: memref<160x160xf32, #tpu.memory_space<vmem>>, %arg6: memref<1x160xf32, #tpu.memory_space<vmem>>, %arg7: memref<8x160xf32, #tpu.memory_space<vmem>>, %arg8: memref<8x160xf32, #tpu.memory_space<vmem>>) attributes {dimension_semantics = [#tpu.dimension_semantics<arbitrary>], iteration_bounds = array<i64: 1>, scalar_prefetch = 0 : i64, scratch_operands = 0 : i64, tpu.core_type = #tpu.core_type<tc>, window_params = [{pipeline_mode = #tpu.pipeline_mode<synchronous>, transform_indices = @transform_0, window_bounds = array<i64: 8, 160>}, {pipeline_mode = #tpu.pipeline_mode<synchronous>, transform_indices = @transform_1, window_bounds = array<i64: 8, 160>}, {pipeline_mode = #tpu.pipeline_mode<synchronous>, transform_indices = @transform_2, window_bounds = array<i64: 160, 160>}, {pipeline_mode = #tpu.pipeline_mode<synchronous>, transform_indices = @transform_3, window_bounds = array<i64: 1, 160>}, {pipeline_mode = #tpu.pipeline_mode<synchronous>, transform_indices = @transform_4, window_bounds = array<i64: 160, 160>}, {pipeline_mode = #tpu.pipeline_mode<synchronous>, transform_indices = @transform_5, window_bounds = array<i64: 1, 160>}, {pipeline_mode = #tpu.pipeline_mode<synchronous>, transform_indices = @transform_6, window_bounds = array<i64: 8, 160>}, {pipeline_mode = #tpu.pipeline_mode<synchronous>, transform_indices = @transform_7, window_bounds = array<i64: 8, 160>}]} {
    %c0 = arith.constant 0 : index
    %c0_0 = arith.constant 0 : index
    %0 = vector.load %arg1[%c0, %c0_0] : memref<8x160xf32, #tpu.memory_space<vmem>>, vector<8x160xf32>
    %c0_1 = arith.constant 0 : index
    %c0_2 = arith.constant 0 : index
    %1 = vector.load %arg2[%c0_1, %c0_2] : memref<8x160xf32, #tpu.memory_space<vmem>>, vector<8x160xf32>
    %2 = tpu.concatenate %0, %1 in 0 : vector<8x160xf32>, vector<8x160xf32> -> vector<16x160xf32>
    %c0_3 = arith.constant 0 : index
    %c0_4 = arith.constant 0 : index
    %3 = vector.load %arg3[%c0_3, %c0_4] : memref<160x160xf32, #tpu.memory_space<vmem>>, vector<160x160xf32>
    %cst = arith.constant dense<0.000000e+00> : vector<16x160xf32>
    %4 = tpu.matmul %2, %3, %cst {dimension_numbers = #tpu.dot_dimension_numbers<[1], [0], [0], [1], [0, 0, 1, 1], [], []>} : vector<16x160xf32>, vector<160x160xf32>, vector<16x160xf32> -> vector<16x160xf32>
    %c0_5 = arith.constant 0 : index
    %c0_6 = arith.constant 0 : index
    %5 = vector.load %arg4[%c0_5, %c0_6] : memref<1x160xf32, #tpu.memory_space<vmem>>, vector<1x160xf32>
    %6 = vector.broadcast %5 : vector<1x160xf32> to vector<16x160xf32>
    %7 = arith.addf %4, %6 : vector<16x160xf32>
    %c0_7 = arith.constant 0 : index
    %c0_8 = arith.constant 0 : index
    %8 = vector.load %arg5[%c0_7, %c0_8] : memref<160x160xf32, #tpu.memory_space<vmem>>, vector<160x160xf32>
    %cst_9 = arith.constant dense<0.000000e+00> : vector<16x160xf32>
    %9 = tpu.matmul %7, %8, %cst_9 {dimension_numbers = #tpu.dot_dimension_numbers<[1], [0], [0], [1], [0, 0, 1, 1], [], []>} : vector<16x160xf32>, vector<160x160xf32>, vector<16x160xf32> -> vector<16x160xf32>
    %c0_10 = arith.constant 0 : index
    %c0_11 = arith.constant 0 : index
    %10 = vector.load %arg6[%c0_10, %c0_11] : memref<1x160xf32, #tpu.memory_space<vmem>>, vector<1x160xf32>
    %11 = vector.broadcast %10 : vector<1x160xf32> to vector<16x160xf32>
    %12 = arith.addf %9, %11 : vector<16x160xf32>
    %13 = vector.extract_strided_slice %12 {offsets = [0, 0], sizes = [8, 160], strides = [1, 1]} : vector<16x160xf32> to vector<8x160xf32>
    %c0_12 = arith.constant 0 : index
    %c0_13 = arith.constant 0 : index
    %14 = vector.load %arg7[%c0_12, %c0_13] : memref<8x160xf32, #tpu.memory_space<vmem>>, vector<8x160xf32>
    tpu.vector_store %arg7[%c0_12, %c0_13], %13 {strides = array<i32>} : memref<8x160xf32, #tpu.memory_space<vmem>>, vector<8x160xf32>,
    %15 = vector.extract_strided_slice %12 {offsets = [8, 0], sizes = [8, 160], strides = [1, 1]} : vector<16x160xf32> to vector<8x160xf32>
    %c0_14 = arith.constant 0 : index
    %c0_15 = arith.constant 0 : index
    %16 = vector.load %arg8[%c0_14, %c0_15] : memref<8x160xf32, #tpu.memory_space<vmem>>, vector<8x160xf32>
    tpu.vector_store %arg8[%c0_14, %c0_15], %15 {strides = array<i32>} : memref<8x160xf32, #tpu.memory_space<vmem>>, vector<8x160xf32>,
    return
  }
  func.func @transform_0(%arg0: i32) -> (i32, i32) {
    %c0_i32 = arith.constant 0 : i32
    %c0_i32_0 = arith.constant 0 : i32
    %c0_i32_1 = arith.constant 0 : i32
    return %c0_i32, %c0_i32_0 : i32, i32
  }
  func.func @transform_1(%arg0: i32) -> (i32, i32) {
    %c0_i32 = arith.constant 0 : i32
    %c0_i32_0 = arith.constant 0 : i32
    %c0_i32_1 = arith.constant 0 : i32
    return %c0_i32, %c0_i32_0 : i32, i32
  }
  func.func @transform_2(%arg0: i32) -> (i32, i32) {
    %c0_i32 = arith.constant 0 : i32
    %c0_i32_0 = arith.constant 0 : i32
    %c0_i32_1 = arith.constant 0 : i32
    return %c0_i32, %c0_i32_0 : i32, i32
  }
  func.func @transform_3(%arg0: i32) -> (i32, i32) {
    %c0_i32 = arith.constant 0 : i32
    %c0_i32_0 = arith.constant 0 : i32
    %c0_i32_1 = arith.constant 0 : i32
    return %c0_i32, %c0_i32_0 : i32, i32
  }
  func.func @transform_4(%arg0: i32) -> (i32, i32) {
    %c0_i32 = arith.constant 0 : i32
    %c0_i32_0 = arith.constant 0 : i32
    %c0_i32_1 = arith.constant 0 : i32
    return %c0_i32, %c0_i32_0 : i32, i32
  }
  func.func @transform_5(%arg0: i32) -> (i32, i32) {
    %c0_i32 = arith.constant 0 : i32
    %c0_i32_0 = arith.constant 0 : i32
    %c0_i32_1 = arith.constant 0 : i32
    return %c0_i32, %c0_i32_0 : i32, i32
  }
  func.func @transform_6(%arg0: i32) -> (i32, i32) {
    %c0_i32 = arith.constant 0 : i32
    %c0_i32_0 = arith.constant 0 : i32
    %c0_i32_1 = arith.constant 0 : i32
    return %c0_i32, %c0_i32_0 : i32, i32
  }
  func.func @transform_7(%arg0: i32) -> (i32, i32) {
    %c0_i32 = arith.constant 0 : i32
    %c0_i32_0 = arith.constant 0 : i32
    %c0_i32_1 = arith.constant 0 : i32
    return %c0_i32, %c0_i32_0 : i32, i32
  }
}

</mosaic_0001>

<llo_original>
// kernel: tpu_custom_call.1
$region0: #{tpu_custom_call.1}
  #allocation0 [shape = 'u32[]', space=smem, size = 0x4, offset = 0x4, fixed_abs, tag = 'smem constant byte address 0x4 - core index']
  #allocation1 [shape = 'u32[72,128]{1,0:T(1,128)}', space=vmem, size = 0x9000, scoped, tag = 'internal scratch']
  %s0 = inlined_call_operand.hbm [shape: f32[8,160], index: 0, kind: input, shape index: {}]
  %s1 = inlined_call_operand.hbm [shape: f32[8,160], index: 1, kind: input, shape index: {}]
  %s2 = inlined_call_operand.hbm [shape: f32[160,160], index: 2, kind: input, shape index: {}]
  %s3 = inlined_call_operand.vmem [shape: f32[1,160], index: 3, kind: input, shape index: {}]
  %s4 = inlined_call_operand.hbm [shape: f32[160,160], index: 4, kind: input, shape index: {}]
  %s5 = inlined_call_operand.vmem [shape: f32[1,160], index: 5, kind: input, shape index: {}]
  %s6 = inlined_call_operand.hbm [shape: f32[8,160], index: 6, kind: output, shape index: {0}]
  %s7 = inlined_call_operand.hbm [shape: f32[8,160], index: 7, kind: output, shape index: {1}]
  %8 = xla_tuple %s6, %s7
  %s9 = sld [smem:[#allocation0]]
  $region58: #{tpu_custom_call.1} parent=0
    _
  %s11 = ssub.s32 1, %s9
  %s12 = scalar_select 0, %s11, %s9
  $region1: #{tpu_custom_call.1} parent=0
    #allocation2 [shape = 'u8[8192]{0}', space=vmem, size = 0x2000, scoped, tag = 'input window, operand 0, single buffered']
    #allocation3 [shape = 's32[1]{0}', space=sflag, size = 0x4, scoped, tag = 'scoped memory for tpu_custom_call.1']
    #allocation4 [shape = 's32[1]{0}', space=sflag, size = 0x4, scoped, tag = 'scoped memory for tpu_custom_call.1']
    #allocation5 [shape = 'u8[8192]{0}', space=vmem, size = 0x2000, scoped, tag = 'input window, operand 1, single buffered']
    #allocation6 [shape = 's32[1]{0}', space=sflag, size = 0x4, scoped, tag = 'scoped memory for tpu_custom_call.1']
    #allocation7 [shape = 'u8[163840]{0}', space=vmem, size = 0x28000, scoped, tag = 'input window, operand 2, single buffered']
    #allocation8 [shape = 'u8[163840]{0}', space=vmem, size = 0x28000, scoped, tag = 'input window, operand 4, single buffered']
    #allocation9 [shape = 's32[1]{0}', space=sflag, size = 0x4, scoped, tag = 'scoped memory for tpu_custom_call.1']
    #allocation10 [shape = 'u8[8192]{0}', space=vmem, size = 0x2000, scoped, tag = 'output window, operand 0, single buffered']
    #allocation11 [shape = 'u8[8192]{0}', space=vmem, size = 0x2000, scoped, tag = 'output window, operand 1, single buffered']
    #allocation12 [shape = 's32[1]{0}', space=sflag, size = 0x4, scoped, tag = 'scoped memory for tpu_custom_call.1']
    %13 = vsyncpa [#allocation3], 0
    %14 = vsyncpa [#allocation6], 0
    %15 = vsyncpa [#allocation9], 0
    %16 = vsyncpa [#allocation4], 0
    %17 = vsyncpa [#allocation12], 0
    // Predicated region
    $region2: #{tpu_custom_call.1} parent=1 // pred_check
      _
    $region3: #{tpu_custom_call.1} parent=1 // pred_check_branch
      %19 = sbr.rel (0) target = $region5
    $region4: #{tpu_custom_call.1} parent=1 // pred_region
      %21 = vsyncadd [#allocation3], 0
      %s23 = sshll.u32 %s0, 4
      %s24 = int_to_ptr.hbm [resolvable:$true] %s23
      %s25 = sshll.u32 [#allocation2], 4
      %s26 = int_to_ptr.vmem [resolvable:$true] %s25
      %28 = dma.hbm_to_vmem [thread:$0]  %s24, 256, %s26, [#allocation3]
    $region5: #{tpu_custom_call.1} parent=1 // pred_fallthru
      _
    // Predicated region
    $region6: #{tpu_custom_call.1} parent=1 // pred_check
      _
    $region7: #{tpu_custom_call.1} parent=1 // pred_check_branch
      %30 = sbr.rel (0) target = $region9
    $region8: #{tpu_custom_call.1} parent=1 // pred_region
      %32 = vsyncadd [#allocation6], 0
      %s34 = sshll.u32 %s1, 4
      %s35 = int_to_ptr.hbm [resolvable:$true] %s34
      %s36 = sshll.u32 [#allocation5], 4
      %s37 = int_to_ptr.vmem [resolvable:$true] %s36
      %39 = dma.hbm_to_vmem [thread:$0]  %s35, 256, %s37, [#allocation6]
    $region9: #{tpu_custom_call.1} parent=1 // pred_fallthru
      _
    // Predicated region
    $region10: #{tpu_custom_call.1} parent=1 // pred_check
      _
    $region11: #{tpu_custom_call.1} parent=1 // pred_check_branch
      %41 = sbr.rel (0) target = $region13
    $region12: #{tpu_custom_call.1} parent=1 // pred_region
      %43 = vsyncadd [#allocation6], 0
      %s44 = sshll.u32 %s2, 4
      %s45 = int_to_ptr.hbm [resolvable:$true] %s44
      %s46 = sshll.u32 [#allocation7], 4
      %s47 = int_to_ptr.vmem [resolvable:$true] %s46
      %52 = dma.hbm_to_vmem [thread:$0]  %s45, 5120, %s47, [#allocation6], 256, 256, 16
    $region13: #{tpu_custom_call.1} parent=1 // pred_fallthru
      _
    // Predicated region
    $region14: #{tpu_custom_call.1} parent=1 // pred_check
      _
    $region15: #{tpu_custom_call.1} parent=1 // pred_check_branch
      %54 = sbr.rel (0) target = $region17
    $region16: #{tpu_custom_call.1} parent=1 // pred_region
      _
    $region17: #{tpu_custom_call.1} parent=1 // pred_fallthru
      _
    // Predicated region
    $region18: #{tpu_custom_call.1} parent=1 // pred_check
      _
    $region19: #{tpu_custom_call.1} parent=1 // pred_check_branch
      %56 = sbr.rel (0) target = $region21
    $region20: #{tpu_custom_call.1} parent=1 // pred_region
      %58 = vsyncadd [#allocation9], 0
      %s59 = sshll.u32 %s4, 4
      %s60 = int_to_ptr.hbm [resolvable:$true] %s59
      %s61 = sshll.u32 [#allocation8], 4
      %s62 = int_to_ptr.vmem [resolvable:$true] %s61
      %67 = dma.hbm_to_vmem [thread:$0]  %s60, 5120, %s62, [#allocation9], 256, 256, 16
    $region21: #{tpu_custom_call.1} parent=1 // pred_fallthru
      _
    // Predicated region
    $region22: #{tpu_custom_call.1} parent=1 // pred_check
      _
    $region23: #{tpu_custom_call.1} parent=1 // pred_check_branch
      %69 = sbr.rel (0) target = $region25
    $region24: #{tpu_custom_call.1} parent=1 // pred_region
      _
    $region25: #{tpu_custom_call.1} parent=1 // pred_fallthru
      _
    // Predicated region
    $region26: #{tpu_custom_call.1} parent=1 // pred_check
      _
    $region27: #{tpu_custom_call.1} parent=1 // pred_check_branch
      %71 = sbr.rel (0) target = $region29
    $region28: #{tpu_custom_call.1} parent=1 // pred_region
      %73 = dma.done [#allocation3], 256
    $region29: #{tpu_custom_call.1} parent=1 // pred_fallthru
      _
    // Predicated region
    $region30: #{tpu_custom_call.1} parent=1 // pred_check
      _
    $region31: #{tpu_custom_call.1} parent=1 // pred_check_branch
      %75 = sbr.rel (0) target = $region33
    $region32: #{tpu_custom_call.1} parent=1 // pred_region
      %77 = dma.done [#allocation6], 256
    $region33: #{tpu_custom_call.1} parent=1 // pred_fallthru
      _
    // Predicated region
    $region34: #{tpu_custom_call.1} parent=1 // pred_check
      _
    $region35: #{tpu_custom_call.1} parent=1 // pred_check_branch
      %79 = sbr.rel (0) target = $region37
    $region36: #{tpu_custom_call.1} parent=1 // pred_region
      %81 = dma.done [#allocation6], 5120
    $region37: #{tpu_custom_call.1} parent=1 // pred_fallthru
      _
    // Predicated region
    $region38: #{tpu_custom_call.1} parent=1 // pred_check
      _
    $region39: #{tpu_custom_call.1} parent=1 // pred_check_branch
      %83 = sbr.rel (0) target = $region41
    $region40: #{tpu_custom_call.1} parent=1 // pred_region
      %85 = dma.done [#allocation9], 5120
    $region41: #{tpu_custom_call.1} parent=1 // pred_fallthru
      _
    %v86 = vld [vmem:[#allocation2] sm:$0xff]
    %v87 = vld [vmem:[#allocation2 + $0x8] sm:$0xff]
    %v88 = vld [vmem:[#allocation5] sm:$0xff]
    %v89 = vld [vmem:[#allocation5 + $0x8] sm:$0xff]
    %v90 = vld [vmem:[#allocation7] sm:$0xff]
    %v91 = vld [vmem:[#allocation7 + $0x8] sm:$0xff]
    %v92 = vld [vmem:[#allocation7 + $0x10] sm:$0xff]
    %v93 = vld [vmem:[#allocation7 + $0x18] sm:$0xff]
    %v94 = vld [vmem:[#allocation7 + $0x20] sm:$0xff]
    %v95 = vld [vmem:[#allocation7 + $0x28] sm:$0xff]
    %v96 = vld [vmem:[#allocation7 + $0x30] sm:$0xff]
    %v97 = vld [vmem:[#allocation7 + $0x38] sm:$0xff]
    %v98 = vld [vmem:[#allocation7 + $0x40] sm:$0xff]
    %v99 = vld [vmem:[#allocation7 + $0x48] sm:$0xff]
    %v100 = vld [vmem:[#allocation7 + $0x50] sm:$0xff]
    %v101 = vld [vmem:[#allocation7 + $0x58] sm:$0xff]
    %v102 = vld [vmem:[#allocation7 + $0x60] sm:$0xff]
    %v103 = vld [vmem:[#allocation7 + $0x68] sm:$0xff]
    %v104 = vld [vmem:[#allocation7 + $0x70] sm:$0xff]
    %v105 = vld [vmem:[#allocation7 + $0x78] sm:$0xff]
    %v106 = vld [vmem:[#allocation7 + $0x80] sm:$0xff]
    %v107 = vld [vmem:[#allocation7 + $0x88] sm:$0xff]
    %v108 = vld [vmem:[#allocation7 + $0x90] sm:$0xff]
    %v109 = vld [vmem:[#allocation7 + $0x98] sm:$0xff]
    %v110 = vld [vmem:[#allocation7 + $0xa0] sm:$0xff]
    %v111 = vld [vmem:[#allocation7 + $0xa8] sm:$0xff]
    %v112 = vld [vmem:[#allocation7 + $0xb0] sm:$0xff]
    %v113 = vld [vmem:[#allocation7 + $0xb8] sm:$0xff]
    %v114 = vld [vmem:[#allocation7 + $0xc0] sm:$0xff]
    %v115 = vld [vmem:[#allocation7 + $0xc8] sm:$0xff]
    %v116 = vld [vmem:[#allocation7 + $0xd0] sm:$0xff]
    %v117 = vld [vmem:[#allocation7 + $0xd8] sm:$0xff]
    %v118 = vld [vmem:[#allocation7 + $0xe0] sm:$0xff]
    %v119 = vld [vmem:[#allocation7 + $0xe8] sm:$0xff]
    %v120 = vld [vmem:[#allocation7 + $0xf0] sm:$0xff]
    %v121 = vld [vmem:[#allocation7 + $0xf8] sm:$0xff]
    %v122 = vld [vmem:[#allocation7 + $0x100] sm:$0xff]
    %v123 = vld [vmem:[#allocation7 + $0x108] sm:$0xff]
    %v124 = vld [vmem:[#allocation7 + $0x110] sm:$0xff]
    %v125 = vld [vmem:[#allocation7 + $0x118] sm:$0xff]
    %v126 = vld [vmem:[#allocation7 + $0x120] sm:$0xff]
    %v127 = vld [vmem:[#allocation7 + $0x128] sm:$0xff]
    %v128 = vld [vmem:[#allocation7 + $0x130] sm:$0xff]
    %v129 = vld [vmem:[#allocation7 + $0x138] sm:$0xff]
    %v130 = vld [vmem:[%s3] sm:$0x3]
    %v132 = vperm.slane %v130, 0
    %v133 = vperm.slane %v130, 1
    %vm136 = vcmask 261120
    %v138 = vsel %vm136, %v87, 0
    %v141 = vsel %vm136, %v89, 0
    %143 = vmatpush.msra.mxu0 %v120
    %144 = vmatpush.msra.mxu0 %v118
    %145 = vmatpush.msra.mxu0 %v116
    %146 = vmatpush.msra.mxu0 %v114
    %147 = vmatpush.msra.mxu0 %v112
    %148 = vmatpush.msra.mxu0 %v110
    %149 = vmatpush.msra.mxu0 %v108
    %150 = vmatpush.msra.mxu0 %v106
    %151 = vmatpush.msra.mxu0 %v104
    %152 = vmatpush.msra.mxu0 %v102
    %153 = vmatpush.msra.mxu0 %v100
    %154 = vmatpush.msra.mxu0 %v98
    %155 = vmatpush.msra.mxu0 %v96
    %156 = vmatpush.msra.mxu0 %v94
    %157 = vmatpush.msra.mxu0 %v92
    %158 = vmatpush.msra.mxu0 %v90
    %159 = vmatmul.f32.gmra.mxu0 %v86
    %v160 = vpop.f32.mrf.mxu0
    %v161 = vadd.f32 %v132, %v160
    %162 = vmatmul.f32.gmra.mxu0 %v88
    %v163 = vpop.f32.mrf.mxu0
    %v164 = vadd.f32 %v132, %v163
    %165 = vdwg.mxu0
    %166 = vmatpush.msra.mxu0 0.0
    %167 = vmatpush.msra.mxu0 0.0
    %168 = vmatpush.msra.mxu0 0.0
    %169 = vmatpush.msra.mxu0 0.0
    %170 = vmatpush.msra.mxu0 0.0
    %171 = vmatpush.msra.mxu0 0.0
    %172 = vmatpush.msra.mxu0 0.0
    %173 = vmatpush.msra.mxu0 0.0
    %174 = vmatpush.msra.mxu0 0.0
    %175 = vmatpush.msra.mxu0 0.0
    %176 = vmatpush.msra.mxu0 0.0
    %177 = vmatpush.msra.mxu0 0.0
    %178 = vmatpush.msra.mxu0 %v128
    %179 = vmatpush.msra.mxu0 %v126
    %180 = vmatpush.msra.mxu0 %v124
    %181 = vmatpush.msra.mxu0 %v122
    %182 = vmatmul.f32.gmra.mxu0 %v138
    %v183 = vpop.f32.mrf.mxu0
    %v184 = vadd.f32 %v161, %v183
    %185 = vmatmul.f32.gmra.mxu0 %v141
    %v186 = vpop.f32.mrf.mxu0
    %v187 = vadd.f32 %v164, %v186
    %188 = vdwg.mxu0
    %189 = vmatpush.msra.mxu0 %v121
    %190 = vmatpush.msra.mxu0 %v119
    %191 = vmatpush.msra.mxu0 %v117
    %192 = vmatpush.msra.mxu0 %v115
    %193 = vmatpush.msra.mxu0 %v113
    %194 = vmatpush.msra.mxu0 %v111
    %195 = vmatpush.msra.mxu0 %v109
    %196 = vmatpush.msra.mxu0 %v107
    %197 = vmatpush.msra.mxu0 %v105
    %198 = vmatpush.msra.mxu0 %v103
    %199 = vmatpush.msra.mxu0 %v101
    %200 = vmatpush.msra.mxu0 %v99
    %201 = vmatpush.msra.mxu0 %v97
    %202 = vmatpush.msra.mxu0 %v95
    %203 = vmatpush.msra.mxu0 %v93
    %204 = vmatpush.msra.mxu0 %v91
    %205 = vmatmul.f32.gmra.mxu0 %v86
    %v206 = vpop.f32.mrf.mxu0
    %v207 = vadd.f32 %v133, %v206
    %208 = vmatmul.f32.gmra.mxu0 %v88
    %v209 = vpop.f32.mrf.mxu0
    %v210 = vadd.f32 %v133, %v209
    %211 = vdwg.mxu0
    %212 = vmatpush.msra.mxu0 0.0
    %213 = vmatpush.msra.mxu0 0.0
    %214 = vmatpush.msra.mxu0 0.0
    %215 = vmatpush.msra.mxu0 0.0
    %216 = vmatpush.msra.mxu0 0.0
    %217 = vmatpush.msra.mxu0 0.0
    %218 = vmatpush.msra.mxu0 0.0
    %219 = vmatpush.msra.mxu0 0.0
    %220 = vmatpush.msra.mxu0 0.0
    %221 = vmatpush.msra.mxu0 0.0
    %222 = vmatpush.msra.mxu0 0.0
    %223 = vmatpush.msra.mxu0 0.0
    %224 = vmatpush.msra.mxu0 %v129
    %225 = vmatpush.msra.mxu0 %v127
    %226 = vmatpush.msra.mxu0 %v125
    %227 = vmatpush.msra.mxu0 %v123
    %228 = vmatmul.f32.gmra.mxu0 %v138
    %v229 = vpop.f32.mrf.mxu0
    %v230 = vadd.f32 %v207, %v229
    %231 = vmatmul.f32.gmra.mxu0 %v141
    %v232 = vpop.f32.mrf.mxu0
    %v233 = vadd.f32 %v210, %v232
    %234 = vdwg.mxu0
    %v235 = vld [vmem:[#allocation8] sm:$0xff]
    %v236 = vld [vmem:[#allocation8 + $0x8] sm:$0xff]
    %v237 = vld [vmem:[#allocation8 + $0x10] sm:$0xff]
    %v238 = vld [vmem:[#allocation8 + $0x18] sm:$0xff]
    %v239 = vld [vmem:[#allocation8 + $0x20] sm:$0xff]
    %v240 = vld [vmem:[#allocation8 + $0x28] sm:$0xff]
    %v241 = vld [vmem:[#allocation8 + $0x30] sm:$0xff]
    %v242 = vld [vmem:[#allocation8 + $0x38] sm:$0xff]
    %v243 = vld [vmem:[#allocation8 + $0x40] sm:$0xff]
    %v244 = vld [vmem:[#allocation8 + $0x48] sm:$0xff]
    %v245 = vld [vmem:[#allocation8 + $0x50] sm:$0xff]
    %v246 = vld [vmem:[#allocation8 + $0x58] sm:$0xff]
    %v247 = vld [vmem:[#allocation8 + $0x60] sm:$0xff]
    %v248 = vld [vmem:[#allocation8 + $0x68] sm:$0xff]
    %v249 = vld [vmem:[#allocation8 + $0x70] sm:$0xff]
    %v250 = vld [vmem:[#allocation8 + $0x78] sm:$0xff]
    %v251 = vld [vmem:[#allocation8 + $0x80] sm:$0xff]
    %v252 = vld [vmem:[#allocation8 + $0x88] sm:$0xff]
    %v253 = vld [vmem:[#allocation8 + $0x90] sm:$0xff]
    %v254 = vld [vmem:[#allocation8 + $0x98] sm:$0xff]
    %v255 = vld [vmem:[#allocation8 + $0xa0] sm:$0xff]
    %v256 = vld [vmem:[#allocation8 + $0xa8] sm:$0xff]
    %v257 = vld [vmem:[#allocation8 + $0xb0] sm:$0xff]
    %v258 = vld [vmem:[#allocation8 + $0xb8] sm:$0xff]
    %v259 = vld [vmem:[#allocation8 + $0xc0] sm:$0xff]
    %v260 = vld [vmem:[#allocation8 + $0xc8] sm:$0xff]
    %v261 = vld [vmem:[#allocation8 + $0xd0] sm:$0xff]
    %v262 = vld [vmem:[#allocation8 + $0xd8] sm:$0xff]
    %v263 = vld [vmem:[#allocation8 + $0xe0] sm:$0xff]
    %v264 = vld [vmem:[#allocation8 + $0xe8] sm:$0xff]
    %v265 = vld [vmem:[#allocation8 + $0xf0] sm:$0xff]
    %v266 = vld [vmem:[#allocation8 + $0xf8] sm:$0xff]
    %v267 = vld [vmem:[#allocation8 + $0x100] sm:$0xff]
    %v268 = vld [vmem:[#allocation8 + $0x108] sm:$0xff]
    %v269 = vld [vmem:[#allocation8 + $0x110] sm:$0xff]
    %v270 = vld [vmem:[#allocation8 + $0x118] sm:$0xff]
    %v271 = vld [vmem:[#allocation8 + $0x120] sm:$0xff]
    %v272 = vld [vmem:[#allocation8 + $0x128] sm:$0xff]
    %v273 = vld [vmem:[#allocation8 + $0x130] sm:$0xff]
    %v274 = vld [vmem:[#allocation8 + $0x138] sm:$0xff]
    %v275 = vld [vmem:[%s5] sm:$0x3]
    %v277 = vperm.slane %v275, 0
    %v278 = vperm.slane %v275, 1
    %v282 = vsel %vm136, %v230, 0
    %v285 = vsel %vm136, %v233, 0
    %287 = vmatpush.msra.mxu0 %v265
    %288 = vmatpush.msra.mxu0 %v263
    %289 = vmatpush.msra.mxu0 %v261
    %290 = vmatpush.msra.mxu0 %v259
    %291 = vmatpush.msra.mxu0 %v257
    %292 = vmatpush.msra.mxu0 %v255
    %293 = vmatpush.msra.mxu0 %v253
    %294 = vmatpush.msra.mxu0 %v251
    %295 = vmatpush.msra.mxu0 %v249
    %296 = vmatpush.msra.mxu0 %v247
    %297 = vmatpush.msra.mxu0 %v245
    %298 = vmatpush.msra.mxu0 %v243
    %299 = vmatpush.msra.mxu0 %v241
    %300 = vmatpush.msra.mxu0 %v239
    %301 = vmatpush.msra.mxu0 %v237
    %302 = vmatpush.msra.mxu0 %v235
    %303 = vmatmul.f32.gmra.mxu0 %v184
    %v304 = vpop.f32.mrf.mxu0
    %v305 = vadd.f32 %v277, %v304
    %306 = vmatmul.f32.gmra.mxu0 %v187
    %v307 = vpop.f32.mrf.mxu0
    %v308 = vadd.f32 %v277, %v307
    %309 = vdwg.mxu0
    %310 = vmatpush.msra.mxu0 0.0
    %311 = vmatpush.msra.mxu0 0.0
    %312 = vmatpush.msra.mxu0 0.0
    %313 = vmatpush.msra.mxu0 0.0
    %314 = vmatpush.msra.mxu0 0.0
    %315 = vmatpush.msra.mxu0 0.0
    %316 = vmatpush.msra.mxu0 0.0
    %317 = vmatpush.msra.mxu0 0.0
    %318 = vmatpush.msra.mxu0 0.0
    %319 = vmatpush.msra.mxu0 0.0
    %320 = vmatpush.msra.mxu0 0.0
    %321 = vmatpush.msra.mxu0 0.0
    %322 = vmatpush.msra.mxu0 %v273
    %323 = vmatpush.msra.mxu0 %v271
    %324 = vmatpush.msra.mxu0 %v269
    %325 = vmatpush.msra.mxu0 %v267
    %326 = vmatmul.f32.gmra.mxu0 %v282
    %v327 = vpop.f32.mrf.mxu0
    %v328 = vadd.f32 %v305, %v327
    %329 = vmatmul.f32.gmra.mxu0 %v285
    %v330 = vpop.f32.mrf.mxu0
    %v331 = vadd.f32 %v308, %v330
    %332 = vdwg.mxu0
    %333 = vmatpush.msra.mxu0 %v266
    %334 = vmatpush.msra.mxu0 %v264
    %335 = vmatpush.msra.mxu0 %v262
    %336 = vmatpush.msra.mxu0 %v260
    %337 = vmatpush.msra.mxu0 %v258
    %338 = vmatpush.msra.mxu0 %v256
    %339 = vmatpush.msra.mxu0 %v254
    %340 = vmatpush.msra.mxu0 %v252
    %341 = vmatpush.msra.mxu0 %v250
    %342 = vmatpush.msra.mxu0 %v248
    %343 = vmatpush.msra.mxu0 %v246
    %344 = vmatpush.msra.mxu0 %v244
    %345 = vmatpush.msra.mxu0 %v242
    %346 = vmatpush.msra.mxu0 %v240
    %347 = vmatpush.msra.mxu0 %v238
    %348 = vmatpush.msra.mxu0 %v236
    %349 = vmatmul.f32.gmra.mxu0 %v184
    %v350 = vpop.f32.mrf.mxu0
    %v351 = vadd.f32 %v278, %v350
    %352 = vmatmul.f32.gmra.mxu0 %v187
    %v353 = vpop.f32.mrf.mxu0
    %v354 = vadd.f32 %v278, %v353
    %355 = vdwg.mxu0
    %356 = vmatpush.msra.mxu0 0.0
    %357 = vmatpush.msra.mxu0 0.0
    %358 = vmatpush.msra.mxu0 0.0
    %359 = vmatpush.msra.mxu0 0.0
    %360 = vmatpush.msra.mxu0 0.0
    %361 = vmatpush.msra.mxu0 0.0
    %362 = vmatpush.msra.mxu0 0.0
    %363 = vmatpush.msra.mxu0 0.0
    %364 = vmatpush.msra.mxu0 0.0
    %365 = vmatpush.msra.mxu0 0.0
    %366 = vmatpush.msra.mxu0 0.0
    %367 = vmatpush.msra.mxu0 0.0
    %368 = vmatpush.msra.mxu0 %v274
    %369 = vmatpush.msra.mxu0 %v272
    %370 = vmatpush.msra.mxu0 %v270
    %371 = vmatpush.msra.mxu0 %v268
    %372 = vmatmul.f32.gmra.mxu0 %v282
    %v373 = vpop.f32.mrf.mxu0
    %v374 = vadd.f32 %v351, %v373
    %375 = vmatmul.f32.gmra.mxu0 %v285
    %v376 = vpop.f32.mrf.mxu0
    %v377 = vadd.f32 %v354, %v376
    %378 = vdwg.mxu0
    %379 = vst [vmem:[#allocation10] sm:$0xff] %v328
    %380 = vst.msk [vmem:[#allocation10 + $0x8] sm:$0xff] %vm136, %v374
    %381 = vst [vmem:[#allocation11] sm:$0xff] %v331
    %382 = vst.msk [vmem:[#allocation11 + $0x8] sm:$0xff] %vm136, %v377
    // Predicated region
    $region42: #{tpu_custom_call.1} parent=1 // pred_check
      _
    $region43: #{tpu_custom_call.1} parent=1 // pred_check_branch
      %384 = sbr.rel (0) target = $region45
    $region44: #{tpu_custom_call.1} parent=1 // pred_region
      %386 = vsyncadd [#allocation4], 0
      %s388 = sshll.u32 [#allocation10], 4
      %s389 = int_to_ptr.vmem [resolvable:$true] %s388
      %s390 = sshll.u32 %s6, 4
      %s391 = int_to_ptr.hbm [resolvable:$true] %s390
      %393 = dma.vmem_to_hbm [thread:$0]  %s389, 256, %s391, [#allocation4]
    $region45: #{tpu_custom_call.1} parent=1 // pred_fallthru
      _
    // Predicated region
    $region46: #{tpu_custom_call.1} parent=1 // pred_check
      _
    $region47: #{tpu_custom_call.1} parent=1 // pred_check_branch
      %395 = sbr.rel (0) target = $region49
    $region48: #{tpu_custom_call.1} parent=1 // pred_region
      %397 = vsyncadd [#allocation12], 0
      %s399 = sshll.u32 [#allocation11], 4
      %s400 = int_to_ptr.vmem [resolvable:$true] %s399
      %s401 = sshll.u32 %s7, 4
      %s402 = int_to_ptr.hbm [resolvable:$true] %s401
      %404 = dma.vmem_to_hbm [thread:$0]  %s400, 256, %s402, [#allocation12]
    $region49: #{tpu_custom_call.1} parent=1 // pred_fallthru
      _
    // Predicated region
    $region50: #{tpu_custom_call.1} parent=1 // pred_check
      _
    $region51: #{tpu_custom_call.1} parent=1 // pred_check_branch
      %406 = sbr.rel (0) target = $region53
    $region52: #{tpu_custom_call.1} parent=1 // pred_region
      %408 = dma.done [#allocation4], 256
    $region53: #{tpu_custom_call.1} parent=1 // pred_fallthru
      _
    // Predicated region
    $region54: #{tpu_custom_call.1} parent=1 // pred_check
      _
    $region55: #{tpu_custom_call.1} parent=1 // pred_check_branch
      %410 = sbr.rel (0) target = $region57
    $region56: #{tpu_custom_call.1} parent=1 // pred_region
      %412 = dma.done [#allocation12], 256
    $region57: #{tpu_custom_call.1} parent=1 // pred_fallthru
      _
    %413 = vsyncpa [#allocation3], 1
    %414 = vsyncpa [#allocation6], 1
    %415 = vsyncpa [#allocation9], 1
    %416 = vsyncpa [#allocation4], 1
    %417 = vsyncpa [#allocation12], 1

</llo_original>
